<compile_context>
chip_gen: v5e
topology: v5e:2x2
jax: 0.10.0
libtpu: 0.0.40
codegen_flags: <defaults>
</compile_context>

<pallas_src>
import functools

import jax
import jax.numpy as jnp
from jax.experimental import pallas as pl
from jax.experimental.pallas import tpu as pltpu


def _layernorm(z, g, b, eps=1e-5):
    # One fused sum / sum-of-squares pass (single cross-lane reduction phase).
    # NOTE: E[x^2]-E[x]^2 can cancel for large-mean inputs; fine for these
    # residual-stream activations in f32.
    d = z.shape[-1]
    inv_d = 1.0 / d
    mu = jnp.sum(z, axis=-1, keepdims=True) * inv_d
    mu2 = jnp.sum(z * z, axis=-1, keepdims=True) * inv_d
    var = mu2 - mu * mu
    return (z - mu) * jax.lax.rsqrt(var + eps) * g + b


def _gelu_tanh(x):
    # tanh-approximate GELU (crypten.nn.functional.gelu is itself an approximation).
    # TODO(synk): exact erf-based GELU if bit-matching an erf reference is required.
    c = jnp.asarray(0.7978845608028654, x.dtype)  # sqrt(2/pi)
    return 0.5 * x * (1.0 + jnp.tanh(c * (x + 0.044715 * x * x * x)))


def _block_kernel(x_ref, g1_ref, b1_ref, wqkv_ref, wproj_ref, bproj_ref,
                  g2_ref, b2_ref, w1_ref, bf1_ref, w2_ref, bf2_ref, o_ref,
                  *, num_heads, head_dim, mlp_chunk):
    bt, S, D = x_ref.shape
    H, hd = num_heads, head_dim
    N = bt * S
    M = w1_ref.shape[1]
    mxu_dtype = wqkv_ref.dtype                         # bfloat16 MXU operands

    x = x_ref[...].reshape(N, D)                        # (bt*S, D) f32

    # ---- norm1 + multi-head attention --------------------------------------
    # Elementwise math stays f32 (v5e VPU/EUP have no bf16); only MXU operands
    # are bf16 and every matmul accumulates in f32.
    h = _layernorm(x, g1_ref[...], b1_ref[...])
    qkv = jnp.dot(h.astype(mxu_dtype), wqkv_ref[...],
                  preferred_element_type=jnp.float32).astype(mxu_dtype)  # (N, 3D)

    # Head-major (H*bt, S, hd) batch layout for the batched attention einsums.
    # The softmax scale is already folded into the Q columns of w_qkv by the
    # wrapper, so no extra multiply here.
    # TODO(synk): Mosaic lacks multi-batch-dim dot_general / (0,2,1,3) transpose
    # lowering, so the lane->batch head split still uses hd-wide slices + concat.
    def head_major(off):
        return jnp.concatenate(
            [qkv[:, off + hh * hd: off + (hh + 1) * hd].reshape(bt, S, hd)
             for hh in range(H)], axis=0)

    q = head_major(0)
    k = head_major(D)
    v = head_major(2 * D)

    s = jnp.einsum("bqd,bkd->bqk", q, k,
                   preferred_element_type=jnp.float32)          # (H*bt, S, S) f32
    s = s - jnp.max(s, axis=-1, keepdims=True)
    p = jnp.exp(s)
    p = p / jnp.sum(p, axis=-1, keepdims=True)                  # exact divide
    o = jnp.einsum("bqk,bkd->bqd", p.astype(mxu_dtype), v,
                   preferred_element_type=jnp.float32)          # (H*bt, S, hd)

    # heads back to the lane axis: (H*bt, S, hd) -> (bt, S, D) -> (N, D)
    attn = jnp.concatenate([o[hh * bt:(hh + 1) * bt] for hh in range(H)], axis=-1)
    attn = attn.reshape(N, D)
    attn = jnp.dot(attn.astype(mxu_dtype), wproj_ref[...],
                   preferred_element_type=jnp.float32) + bproj_ref[...]
    x1 = x + attn

    # ---- norm2 + MLP, tiled along the hidden (mlp_dim) axis -----------------
    # Bounds the live hidden activation to (N, mlp_chunk) instead of the full
    # (N, mlp_dim) f32 tensor (mandatory VMEM headroom on v7x).
    h2 = _layernorm(x1, g2_ref[...], b2_ref[...]).astype(mxu_dtype)
    acc = jnp.zeros((N, D), jnp.float32)
    for c0 in range(0, M, mlp_chunk):
        cm = min(mlp_chunk, M - c0)
        f = jnp.dot(h2, w1_ref[:, c0:c0 + cm],
                    preferred_element_type=jnp.float32) + bf1_ref[:, c0:c0 + cm]
        f = _gelu_tanh(f)                                        # f32 EUP tanh
        acc = acc + jnp.dot(f.astype(mxu_dtype), w2_ref[c0:c0 + cm, :],
                            preferred_element_type=jnp.float32)

    o_ref[...] = (x1 + acc + bf2_ref[...]).reshape(bt, S, D).astype(o_ref.dtype)


def vit_block(x, params, num_heads, block_b=None, mlp_chunk=512):
    B, S, D = x.shape
    head_dim = D // num_heads
    scale = float(head_dim) ** -0.5
    M = params["w_fc1"].shape[1]
    mlp_chunk = min(mlp_chunk, M)

    # TODO(synk): for real ViT sequence lengths (e.g. S=197) pad S to a multiple
    # of 8 and mask padded keys with -inf before the softmax.

    # --- parameter prep (outside the kernel, free at param-prep time) -------
    #  * softmax scale folded into the Q columns of w_qkv,
    #  * the four GEMM weights cast to bf16 (MXU operands, f32 accumulation),
    #  * biases / LayerNorm params stay f32.
    w_qkv = jnp.concatenate(
        [params["w_qkv"][:, :D] * scale, params["w_qkv"][:, D:]], axis=1
    ).astype(jnp.bfloat16)
    w_proj = params["w_proj"].astype(jnp.bfloat16)
    w_fc1 = params["w_fc1"].astype(jnp.bfloat16)
    w_fc2 = params["w_fc2"].astype(jnp.bfloat16)

    if block_b is None:
        # >= 2 grid steps when B >= 2 so v7x megacore can shard the "parallel"
        # batch axis; target ~512 GEMM rows per step for the 256-wide MXU,
        # which also bounds the (H*block_b, S, S) f32 score scratch.
        cap = B if B == 1 else B // 2
        cap = min(cap, max(1, pl.cdiv(512, S)))
        block_b = next(bt for bt in range(cap, 0, -1) if B % bt == 0)
    assert B % block_b == 0

    kern = functools.partial(
        _block_kernel, num_heads=num_heads, head_dim=head_dim,
        mlp_chunk=mlp_chunk)

    def const_spec(shape):
        # Grid-invariant parameter block: single-buffered (it never changes),
        # which halves its resident VMEM vs the default double buffering.
        nd = len(shape)
        return pl.BlockSpec(shape, lambda b, _nd=nd: (0,) * _nd,
                            pipeline_mode=pl.Buffered(buffer_count=1))

    # Per-generation VMEM budget with ~20% headroom for compiler scratch
    # (v7x: 64 MiB physical; v5e/v6e: 128 MiB).
    try:
        vmem_limit = int(0.8 * pltpu.get_tpu_info().vmem_capacity_bytes)
    except Exception:
        vmem_limit = None

    return pl.pallas_call(
        kern,
        out_shape=jax.ShapeDtypeStruct((B, S, D), x.dtype),
        grid=(B // block_b,),
        in_specs=[
            pl.BlockSpec((block_b, S, D), lambda b: (b, 0, 0)),   # x block
            const_spec((1, D)), const_spec((1, D)),               # ln1 gamma, beta
            const_spec((D, 3 * D)),                               # qkv weight (bf16)
            const_spec((D, D)), const_spec((1, D)),               # proj weight, bias
            const_spec((1, D)), const_spec((1, D)),               # ln2 gamma, beta
            const_spec((D, M)), const_spec((1, M)),               # fc1 weight, bias
            const_spec((M, D)), const_spec((1, D)),               # fc2 weight, bias
        ],
        out_specs=pl.BlockSpec((block_b, S, D), lambda b: (b, 0, 0)),
        compiler_params=pltpu.CompilerParams(
            dimension_semantics=("parallel",),        # batch axis is independent
            vmem_limit_bytes=vmem_limit),
    )(x, params["g1"], params["b1"], w_qkv, w_proj,
      params["b_proj"], params["g2"], params["b2"], w_fc1,
      params["b_fc1"], w_fc2, params["b_fc2"])


def vit_block_ref(x, p, num_heads):
    """Pure-JAX f32 reference mirroring the PyTorch Block.forward semantics."""
    B, S, D = x.shape
    hd = D // num_heads

    def ln(z, g, b, eps=1e-5):
        mu = jnp.mean(z, axis=-1, keepdims=True)
        var = jnp.mean((z - mu) ** 2, axis=-1, keepdims=True)
        return (z - mu) * jax.lax.rsqrt(var + eps) * g + b

    h = ln(x, p["g1"], p["b1"])
    qkv = h @ p["w_qkv"]
    q, k, v = jnp.split(qkv, 3, axis=-1)

    def heads(t):
        return t.reshape(B, S, num_heads, hd).transpose(0, 2, 1, 3)

    q, k, v = heads(q), heads(k), heads(v)
    s = jnp.einsum("bhqd,bhkd->bhqk", q, k) * (float(hd) ** -0.5)
    a = jax.nn.softmax(s, axis=-1)
    o = jnp.einsum("bhqk,bhkd->bhqd", a, v).transpose(0, 2, 1, 3).reshape(B, S, D)
    o = o @ p["w_proj"] + p["b_proj"]
    x1 = x + o
    h2 = ln(x1, p["g2"], p["b2"])
    f = _gelu_tanh(h2 @ p["w_fc1"] + p["b_fc1"])
    return x1 + f @ p["w_fc2"] + p["b_fc2"]


def make_params(key, dim, mlp_dim):
    ks = jax.random.split(key, 5)
    scale = 0.02
    return {
        "g1": jnp.ones((1, dim), jnp.float32),
        "b1": jnp.zeros((1, dim), jnp.float32),
        "w_qkv": scale * jax.random.normal(ks[0], (dim, 3 * dim), jnp.float32),
        "w_proj": scale * jax.random.normal(ks[1], (dim, dim), jnp.float32),
        "b_proj": scale * jax.random.normal(ks[2], (1, dim), jnp.float32),
        "g2": jnp.ones((1, dim), jnp.float32),
        "b2": jnp.zeros((1, dim), jnp.float32),
        "w_fc1": scale * jax.random.normal(ks[3], (dim, mlp_dim), jnp.float32),
        "b_fc1": jnp.zeros((1, mlp_dim), jnp.float32),
        "w_fc2": scale * jax.random.normal(ks[4], (mlp_dim, dim), jnp.float32),
        "b_fc2": jnp.zeros((1, dim), jnp.float32),
    }


if __name__ == "__main__":
    B, S, dim, num_heads, mlp_dim = 2, 8, 32, 4, 64
    key = jax.random.PRNGKey(0)
    kx, kp = jax.random.split(key)
    x = jax.random.normal(kx, (B, S, dim), jnp.float32)
    params = make_params(kp, dim, mlp_dim)

    out = jax.jit(functools.partial(vit_block, num_heads=num_heads))(x, params)
    out = jax.block_until_ready(out)

    ref = vit_block_ref(x, params, num_heads)
    assert out.shape == (B, S, dim)
    # bf16 MXU operands (with f32 accumulation) vs the all-f32 reference.
    assert jnp.allclose(out, ref, atol=2e-2, rtol=2e-2), "mismatch vs JAX reference"

    print("KERNEL_OK")
</pallas_src>

<mosaic_0001>
module attributes {stable_mosaic.version = 11 : i64} {
  func.func @_block_kernel(%arg0: i32, %arg1: memref<1x8x32xf32, #tpu.memory_space<vmem>>, %arg2: memref<1x32xf32, #tpu.memory_space<vmem>>, %arg3: memref<1x32xf32, #tpu.memory_space<vmem>>, %arg4: memref<32x96xbf16, #tpu.memory_space<vmem>>, %arg5: memref<32x32xbf16, #tpu.memory_space<vmem>>, %arg6: memref<1x32xf32, #tpu.memory_space<vmem>>, %arg7: memref<1x32xf32, #tpu.memory_space<vmem>>, %arg8: memref<1x32xf32, #tpu.memory_space<vmem>>, %arg9: memref<32x64xbf16, #tpu.memory_space<vmem>>, %arg10: memref<1x64xf32, #tpu.memory_space<vmem>>, %arg11: memref<64x32xbf16, #tpu.memory_space<vmem>>, %arg12: memref<1x32xf32, #tpu.memory_space<vmem>>, %arg13: memref<1x8x32xf32, #tpu.memory_space<vmem>>) attributes {dimension_semantics = [#tpu.dimension_semantics<parallel>], iteration_bounds = array<i64: 2>, scalar_prefetch = 0 : i64, scratch_operands = 0 : i64, tpu.core_type = #tpu.core_type<tc>, window_params = [{transform_indices = @transform_0, window_bounds = array<i64: 1, 8, 32>}, {pipeline_mode = #tpu.pipeline_mode<synchronous>, transform_indices = @transform_1, window_bounds = array<i64: 1, 32>}, {pipeline_mode = #tpu.pipeline_mode<synchronous>, transform_indices = @transform_2, window_bounds = array<i64: 1, 32>}, {pipeline_mode = #tpu.pipeline_mode<synchronous>, transform_indices = @transform_3, window_bounds = array<i64: 32, 96>}, {pipeline_mode = #tpu.pipeline_mode<synchronous>, transform_indices = @transform_4, window_bounds = array<i64: 32, 32>}, {pipeline_mode = #tpu.pipeline_mode<synchronous>, transform_indices = @transform_5, window_bounds = array<i64: 1, 32>}, {pipeline_mode = #tpu.pipeline_mode<synchronous>, transform_indices = @transform_6, window_bounds = array<i64: 1, 32>}, {pipeline_mode = #tpu.pipeline_mode<synchronous>, transform_indices = @transform_7, window_bounds = array<i64: 1, 32>}, {pipeline_mode = #tpu.pipeline_mode<synchronous>, transform_indices = @transform_8, window_bounds = array<i64: 32, 64>}, {pipeline_mode = #tpu.pipeline_mode<synchronous>, transform_indices = @transform_9, window_bounds = array<i64: 1, 64>}, {pipeline_mode = #tpu.pipeline_mode<synchronous>, transform_indices = @transform_10, window_bounds = array<i64: 64, 32>}, {pipeline_mode = #tpu.pipeline_mode<synchronous>, transform_indices = @transform_11, window_bounds = array<i64: 1, 32>}, {transform_indices = @transform_12, window_bounds = array<i64: 1, 8, 32>}]} {
    %c0 = arith.constant 0 : index
    %c0_0 = arith.constant 0 : index
    %c0_1 = arith.constant 0 : index
    %0 = vector.load %arg1[%c0, %c0_0, %c0_1] : memref<1x8x32xf32, #tpu.memory_space<vmem>>, vector<1x8x32xf32>
    %1 = vector.shape_cast %0 : vector<1x8x32xf32> to vector<8x32xf32>
    %c0_2 = arith.constant 0 : index
    %c0_3 = arith.constant 0 : index
    %2 = vector.load %arg2[%c0_2, %c0_3] : memref<1x32xf32, #tpu.memory_space<vmem>>, vector<1x32xf32>
    %c0_4 = arith.constant 0 : index
    %c0_5 = arith.constant 0 : index
    %3 = vector.load %arg3[%c0_4, %c0_5] : memref<1x32xf32, #tpu.memory_space<vmem>>, vector<1x32xf32>
    %cst = arith.constant dense<0.000000e+00> : vector<8xf32>
    %4 = vector.multi_reduction <add>, %1, %cst [1] : vector<8x32xf32> to vector<8xf32>
    %5 = vector.shape_cast %4 : vector<8xf32> to vector<8x1xf32>
    %cst_6 = arith.constant 3.125000e-02 : f32
    %6 = vector.broadcast %cst_6 : f32 to vector<8x1xf32>
    %7 = arith.mulf %5, %6 : vector<8x1xf32>
    %8 = arith.mulf %1, %1 : vector<8x32xf32>
    %cst_7 = arith.constant dense<0.000000e+00> : vector<8xf32>
    %9 = vector.multi_reduction <add>, %8, %cst_7 [1] : vector<8x32xf32> to vector<8xf32>
    %10 = vector.shape_cast %9 : vector<8xf32> to vector<8x1xf32>
    %cst_8 = arith.constant 3.125000e-02 : f32
    %11 = vector.broadcast %cst_8 : f32 to vector<8x1xf32>
    %12 = arith.mulf %10, %11 : vector<8x1xf32>
    %13 = arith.mulf %7, %7 : vector<8x1xf32>
    %14 = arith.subf %12, %13 : vector<8x1xf32>
    %15 = vector.broadcast %7 : vector<8x1xf32> to vector<8x32xf32>
    %16 = arith.subf %1, %15 : vector<8x32xf32>
    %cst_9 = arith.constant 9.99999974E-6 : f32
    %17 = vector.broadcast %cst_9 : f32 to vector<8x1xf32>
    %18 = arith.addf %14, %17 : vector<8x1xf32>
    %19 = math.rsqrt %18 : vector<8x1xf32>
    %20 = vector.broadcast %19 : vector<8x1xf32> to vector<8x32xf32>
    %21 = arith.mulf %16, %20 : vector<8x32xf32>
    %22 = vector.broadcast %2 : vector<1x32xf32> to vector<8x32xf32>
    %23 = arith.mulf %21, %22 : vector<8x32xf32>
    %24 = vector.broadcast %3 : vector<1x32xf32> to vector<8x32xf32>
    %25 = arith.addf %23, %24 : vector<8x32xf32>
    %26 = arith.truncf %25 : vector<8x32xf32> to vector<8x32xbf16>
    %c0_10 = arith.constant 0 : index
    %c0_11 = arith.constant 0 : index
    %27 = vector.load %arg4[%c0_10, %c0_11] : memref<32x96xbf16, #tpu.memory_space<vmem>>, vector<32x96xbf16>
    %cst_12 = arith.constant dense<0.000000e+00> : vector<8x96xf32>
    %28 = tpu.matmul %26, %27, %cst_12 {dimension_numbers = #tpu.dot_dimension_numbers<[1], [0], [0], [1], [0, 0, 1, 1], [], []>} : vector<8x32xbf16>, vector<32x96xbf16>, vector<8x96xf32> -> vector<8x96xf32>
    %29 = arith.truncf %28 : vector<8x96xf32> to vector<8x96xbf16>
    %30 = vector.extract_strided_slice %29 {offsets = [0, 0], sizes = [8, 8], strides = [1, 1]} : vector<8x96xbf16> to vector<8x8xbf16>
    %31 = vector.shape_cast %30 : vector<8x8xbf16> to vector<1x8x8xbf16>
    %32 = vector.extract_strided_slice %29 {offsets = [0, 8], sizes = [8, 8], strides = [1, 1]} : vector<8x96xbf16> to vector<8x8xbf16>
    %33 = vector.shape_cast %32 : vector<8x8xbf16> to vector<1x8x8xbf16>
    %34 = vector.extract_strided_slice %29 {offsets = [0, 16], sizes = [8, 8], strides = [1, 1]} : vector<8x96xbf16> to vector<8x8xbf16>
    %35 = vector.shape_cast %34 : vector<8x8xbf16> to vector<1x8x8xbf16>
    %36 = vector.extract_strided_slice %29 {offsets = [0, 24], sizes = [8, 8], strides = [1, 1]} : vector<8x96xbf16> to vector<8x8xbf16>
    %37 = vector.shape_cast %36 : vector<8x8xbf16> to vector<1x8x8xbf16>
    %38 = tpu.concatenate %31, %33, %35, %37 in 0 : vector<1x8x8xbf16>, vector<1x8x8xbf16>, vector<1x8x8xbf16>, vector<1x8x8xbf16> -> vector<4x8x8xbf16>
    %39 = vector.extract_strided_slice %29 {offsets = [0, 32], sizes = [8, 8], strides = [1, 1]} : vector<8x96xbf16> to vector<8x8xbf16>
    %40 = vector.shape_cast %39 : vector<8x8xbf16> to vector<1x8x8xbf16>
    %41 = vector.extract_strided_slice %29 {offsets = [0, 40], sizes = [8, 8], strides = [1, 1]} : vector<8x96xbf16> to vector<8x8xbf16>
    %42 = vector.shape_cast %41 : vector<8x8xbf16> to vector<1x8x8xbf16>
    %43 = vector.extract_strided_slice %29 {offsets = [0, 48], sizes = [8, 8], strides = [1, 1]} : vector<8x96xbf16> to vector<8x8xbf16>
    %44 = vector.shape_cast %43 : vector<8x8xbf16> to vector<1x8x8xbf16>
    %45 = vector.extract_strided_slice %29 {offsets = [0, 56], sizes = [8, 8], strides = [1, 1]} : vector<8x96xbf16> to vector<8x8xbf16>
    %46 = vector.shape_cast %45 : vector<8x8xbf16> to vector<1x8x8xbf16>
    %47 = tpu.concatenate %40, %42, %44, %46 in 0 : vector<1x8x8xbf16>, vector<1x8x8xbf16>, vector<1x8x8xbf16>, vector<1x8x8xbf16> -> vector<4x8x8xbf16>
    %48 = vector.extract_strided_slice %29 {offsets = [0, 64], sizes = [8, 8], strides = [1, 1]} : vector<8x96xbf16> to vector<8x8xbf16>
    %49 = vector.shape_cast %48 : vector<8x8xbf16> to vector<1x8x8xbf16>
    %50 = vector.extract_strided_slice %29 {offsets = [0, 72], sizes = [8, 8], strides = [1, 1]} : vector<8x96xbf16> to vector<8x8xbf16>
    %51 = vector.shape_cast %50 : vector<8x8xbf16> to vector<1x8x8xbf16>
    %52 = vector.extract_strided_slice %29 {offsets = [0, 80], sizes = [8, 8], strides = [1, 1]} : vector<8x96xbf16> to vector<8x8xbf16>
    %53 = vector.shape_cast %52 : vector<8x8xbf16> to vector<1x8x8xbf16>
    %54 = vector.extract_strided_slice %29 {offsets = [0, 88], sizes = [8, 8], strides = [1, 1]} : vector<8x96xbf16> to vector<8x8xbf16>
    %55 = vector.shape_cast %54 : vector<8x8xbf16> to vector<1x8x8xbf16>
    %56 = tpu.concatenate %49, %51, %53, %55 in 0 : vector<1x8x8xbf16>, vector<1x8x8xbf16>, vector<1x8x8xbf16>, vector<1x8x8xbf16> -> vector<4x8x8xbf16>
    "tpu.trace_start"() <{level = 10 : i32, message = "bqd,bkd->bqk"}> : () -> ()
    %cst_13 = arith.constant dense<0.000000e+00> : vector<4x8x8xf32>
    %57 = tpu.matmul %38, %47, %cst_13 {dimension_numbers = #tpu.dot_dimension_numbers<[2], [2], [1], [1], [0, 0, 0, 1, 1, 1], [0], [0]>} : vector<4x8x8xbf16>, vector<4x8x8xbf16>, vector<4x8x8xf32> -> vector<4x8x8xf32>
    "tpu.trace_stop"() : () -> ()
    %cst_14 = arith.constant dense<0xFF800000> : vector<4x8xf32>
    %58 = vector.multi_reduction <maximumf>, %57, %cst_14 [2] : vector<4x8x8xf32> to vector<4x8xf32>
    %59 = vector.shape_cast %58 : vector<4x8xf32> to vector<4x8x1xf32>
    %60 = vector.broadcast %59 : vector<4x8x1xf32> to vector<4x8x8xf32>
    %61 = arith.subf %57, %60 : vector<4x8x8xf32>
    %62 = math.exp %61 : vector<4x8x8xf32>
    %cst_15 = arith.constant dense<0.000000e+00> : vector<4x8xf32>
    %63 = vector.multi_reduction <add>, %62, %cst_15 [2] : vector<4x8x8xf32> to vector<4x8xf32>
    %64 = vector.shape_cast %63 : vector<4x8xf32> to vector<4x8x1xf32>
    %65 = vector.broadcast %64 : vector<4x8x1xf32> to vector<4x8x8xf32>
    %66 = arith.divf %62, %65 : vector<4x8x8xf32>
    %67 = arith.truncf %66 : vector<4x8x8xf32> to vector<4x8x8xbf16>
    "tpu.trace_start"() <{level = 10 : i32, message = "bqk,bkd->bqd"}> : () -> ()
    %cst_16 = arith.constant dense<0.000000e+00> : vector<4x8x8xf32>
    %68 = tpu.matmul %67, %56, %cst_16 {dimension_numbers = #tpu.dot_dimension_numbers<[2], [1], [1], [2], [0, 0, 0, 1, 1, 2], [0], [0]>} : vector<4x8x8xbf16>, vector<4x8x8xbf16>, vector<4x8x8xf32> -> vector<4x8x8xf32>
    "tpu.trace_stop"() : () -> ()
    %69 = vector.extract_strided_slice %68 {offsets = [0, 0, 0], sizes = [1, 8, 8], strides = [1, 1, 1]} : vector<4x8x8xf32> to vector<1x8x8xf32>
    %70 = vector.extract_strided_slice %68 {offsets = [1, 0, 0], sizes = [1, 8, 8], strides = [1, 1, 1]} : vector<4x8x8xf32> to vector<1x8x8xf32>
    %71 = vector.extract_strided_slice %68 {offsets = [2, 0, 0], sizes = [1, 8, 8], strides = [1, 1, 1]} : vector<4x8x8xf32> to vector<1x8x8xf32>
    %72 = vector.extract_strided_slice %68 {offsets = [3, 0, 0], sizes = [1, 8, 8], strides = [1, 1, 1]} : vector<4x8x8xf32> to vector<1x8x8xf32>
    %73 = tpu.concatenate %69, %70, %71, %72 in 2 : vector<1x8x8xf32>, vector<1x8x8xf32>, vector<1x8x8xf32>, vector<1x8x8xf32> -> vector<1x8x32xf32>
    %74 = vector.shape_cast %73 : vector<1x8x32xf32> to vector<8x32xf32>
    %75 = arith.truncf %74 : vector<8x32xf32> to vector<8x32xbf16>
    %c0_17 = arith.constant 0 : index
    %c0_18 = arith.constant 0 : index
    %76 = vector.load %arg5[%c0_17, %c0_18] : memref<32x32xbf16, #tpu.memory_space<vmem>>, vector<32x32xbf16>
    %cst_19 = arith.constant dense<0.000000e+00> : vector<8x32xf32>
    %77 = tpu.matmul %75, %76, %cst_19 {dimension_numbers = #tpu.dot_dimension_numbers<[1], [0], [0], [1], [0, 0, 1, 1], [], []>} : vector<8x32xbf16>, vector<32x32xbf16>, vector<8x32xf32> -> vector<8x32xf32>
    %c0_20 = arith.constant 0 : index
    %c0_21 = arith.constant 0 : index
    %78 = vector.load %arg6[%c0_20, %c0_21] : memref<1x32xf32, #tpu.memory_space<vmem>>, vector<1x32xf32>
    %79 = vector.broadcast %78 : vector<1x32xf32> to vector<8x32xf32>
    %80 = arith.addf %77, %79 : vector<8x32xf32>
    %81 = arith.addf %1, %80 : vector<8x32xf32>
    %c0_22 = arith.constant 0 : index
    %c0_23 = arith.constant 0 : index
    %82 = vector.load %arg7[%c0_22, %c0_23] : memref<1x32xf32, #tpu.memory_space<vmem>>, vector<1x32xf32>
    %c0_24 = arith.constant 0 : index
    %c0_25 = arith.constant 0 : index
    %83 = vector.load %arg8[%c0_24, %c0_25] : memref<1x32xf32, #tpu.memory_space<vmem>>, vector<1x32xf32>
    %cst_26 = arith.constant dense<0.000000e+00> : vector<8xf32>
    %84 = vector.multi_reduction <add>, %81, %cst_26 [1] : vector<8x32xf32> to vector<8xf32>
    %85 = vector.shape_cast %84 : vector<8xf32> to vector<8x1xf32>
    %cst_27 = arith.constant 3.125000e-02 : f32
    %86 = vector.broadcast %cst_27 : f32 to vector<8x1xf32>
    %87 = arith.mulf %85, %86 : vector<8x1xf32>
    %88 = arith.mulf %81, %81 : vector<8x32xf32>
    %cst_28 = arith.constant dense<0.000000e+00> : vector<8xf32>
    %89 = vector.multi_reduction <add>, %88, %cst_28 [1] : vector<8x32xf32> to vector<8xf32>
    %90 = vector.shape_cast %89 : vector<8xf32> to vector<8x1xf32>
    %cst_29 = arith.constant 3.125000e-02 : f32
    %91 = vector.broadcast %cst_29 : f32 to vector<8x1xf32>
    %92 = arith.mulf %90, %91 : vector<8x1xf32>
    %93 = arith.mulf %87, %87 : vector<8x1xf32>
    %94 = arith.subf %92, %93 : vector<8x1xf32>
    %95 = vector.broadcast %87 : vector<8x1xf32> to vector<8x32xf32>
    %96 = arith.subf %81, %95 : vector<8x32xf32>
    %cst_30 = arith.constant 9.99999974E-6 : f32
    %97 = vector.broadcast %cst_30 : f32 to vector<8x1xf32>
    %98 = arith.addf %94, %97 : vector<8x1xf32>
    %99 = math.rsqrt %98 : vector<8x1xf32>
    %100 = vector.broadcast %99 : vector<8x1xf32> to vector<8x32xf32>
    %101 = arith.mulf %96, %100 : vector<8x32xf32>
    %102 = vector.broadcast %82 : vector<1x32xf32> to vector<8x32xf32>
    %103 = arith.mulf %101, %102 : vector<8x32xf32>
    %104 = vector.broadcast %83 : vector<1x32xf32> to vector<8x32xf32>
    %105 = arith.addf %103, %104 : vector<8x32xf32>
    %106 = arith.truncf %105 : vector<8x32xf32> to vector<8x32xbf16>
    %cst_31 = arith.constant 0.000000e+00 : f32
    %107 = vector.broadcast %cst_31 : f32 to vector<8x32xf32>
    %c0_32 = arith.constant 0 : index
    %c0_33 = arith.constant 0 : index
    %108 = vector.load %arg9[%c0_32, %c0_33] : memref<32x64xbf16, #tpu.memory_space<vmem>>, vector<32x64xbf16>
    %cst_34 = arith.constant dense<0.000000e+00> : vector<8x64xf32>
    %109 = tpu.matmul %106, %108, %cst_34 {dimension_numbers = #tpu.dot_dimension_numbers<[1], [0], [0], [1], [0, 0, 1, 1], [], []>} : vector<8x32xbf16>, vector<32x64xbf16>, vector<8x64xf32> -> vector<8x64xf32>
    %c0_35 = arith.constant 0 : index
    %c0_36 = arith.constant 0 : index
    %110 = vector.load %arg10[%c0_35, %c0_36] : memref<1x64xf32, #tpu.memory_space<vmem>>, vector<1x64xf32>
    %111 = vector.broadcast %110 : vector<1x64xf32> to vector<8x64xf32>
    %112 = arith.addf %109, %111 : vector<8x64xf32>
    %cst_37 = arith.constant 5.000000e-01 : f32
    %113 = vector.broadcast %cst_37 : f32 to vector<8x64xf32>
    %114 = arith.mulf %113, %112 : vector<8x64xf32>
    %cst_38 = arith.constant 4.471500e-02 : f32
    %115 = vector.broadcast %cst_38 : f32 to vector<8x64xf32>
    %116 = arith.mulf %115, %112 : vector<8x64xf32>
    %117 = arith.mulf %116, %112 : vector<8x64xf32>
    %118 = arith.mulf %117, %112 : vector<8x64xf32>
    %119 = arith.addf %112, %118 : vector<8x64xf32>
    %cst_39 = arith.constant 0.797884583 : f32
    %120 = vector.broadcast %cst_39 : f32 to vector<8x64xf32>
    %121 = arith.mulf %120, %119 : vector<8x64xf32>
    %122 = math.tanh %121 : vector<8x64xf32>
    %cst_40 = arith.constant 1.000000e+00 : f32
    %123 = vector.broadcast %cst_40 : f32 to vector<8x64xf32>
    %124 = arith.addf %123, %122 : vector<8x64xf32>
    %125 = arith.mulf %114, %124 : vector<8x64xf32>
    %126 = arith.truncf %125 : vector<8x64xf32> to vector<8x64xbf16>
    %c0_41 = arith.constant 0 : index
    %c0_42 = arith.constant 0 : index
    %127 = vector.load %arg11[%c0_41, %c0_42] : memref<64x32xbf16, #tpu.memory_space<vmem>>, vector<64x32xbf16>
    %cst_43 = arith.constant dense<0.000000e+00> : vector<8x32xf32>
    %128 = tpu.matmul %126, %127, %cst_43 {dimension_numbers = #tpu.dot_dimension_numbers<[1], [0], [0], [1], [0, 0, 1, 1], [], []>} : vector<8x64xbf16>, vector<64x32xbf16>, vector<8x32xf32> -> vector<8x32xf32>
    %129 = arith.addf %107, %128 : vector<8x32xf32>
    %130 = arith.addf %81, %129 : vector<8x32xf32>
    %c0_44 = arith.constant 0 : index
    %c0_45 = arith.constant 0 : index
    %131 = vector.load %arg12[%c0_44, %c0_45] : memref<1x32xf32, #tpu.memory_space<vmem>>, vector<1x32xf32>
    %132 = vector.broadcast %131 : vector<1x32xf32> to vector<8x32xf32>
    %133 = arith.addf %130, %132 : vector<8x32xf32>
    %134 = vector.shape_cast %133 : vector<8x32xf32> to vector<1x8x32xf32>
    %c0_46 = arith.constant 0 : index
    %c0_47 = arith.constant 0 : index
    %c0_48 = arith.constant 0 : index
    %135 = vector.load %arg13[%c0_46, %c0_47, %c0_48] : memref<1x8x32xf32, #tpu.memory_space<vmem>>, vector<1x8x32xf32>
    tpu.vector_store %arg13[%c0_46, %c0_47, %c0_48], %134 {strides = array<i32>} : memref<1x8x32xf32, #tpu.memory_space<vmem>>, vector<1x8x32xf32>,
    return
  }
  func.func @transform_0(%arg0: i32) -> (i32, i32, i32) {
    %c0_i32 = arith.constant 0 : i32
    %c0_i32_0 = arith.constant 0 : i32
    %c0_i32_1 = arith.constant 0 : i32
    return %arg0, %c0_i32, %c0_i32_0 : i32, i32, i32
  }
  func.func @transform_1(%arg0: i32) -> (i32, i32) {
    %c0_i32 = arith.constant 0 : i32
    %c0_i32_0 = arith.constant 0 : i32
    %c0_i32_1 = arith.constant 0 : i32
    return %c0_i32, %c0_i32_0 : i32, i32
  }
  func.func @transform_2(%arg0: i32) -> (i32, i32) {
    %c0_i32 = arith.constant 0 : i32
    %c0_i32_0 = arith.constant 0 : i32
    %c0_i32_1 = arith.constant 0 : i32
    return %c0_i32, %c0_i32_0 : i32, i32
  }
  func.func @transform_3(%arg0: i32) -> (i32, i32) {
    %c0_i32 = arith.constant 0 : i32
    %c0_i32_0 = arith.constant 0 : i32
    %c0_i32_1 = arith.constant 0 : i32
    return %c0_i32, %c0_i32_0 : i32, i32
  }
  func.func @transform_4(%arg0: i32) -> (i32, i32) {
    %c0_i32 = arith.constant 0 : i32
    %c0_i32_0 = arith.constant 0 : i32
    %c0_i32_1 = arith.constant 0 : i32
    return %c0_i32, %c0_i32_0 : i32, i32
  }
  func.func @transform_5(%arg0: i32) -> (i32, i32) {
    %c0_i32 = arith.constant 0 : i32
    %c0_i32_0 = arith.constant 0 : i32
    %c0_i32_1 = arith.constant 0 : i32
    return %c0_i32, %c0_i32_0 : i32, i32
  }
  func.func @transform_6(%arg0: i32) -> (i32, i32) {
    %c0_i32 = arith.constant 0 : i32
    %c0_i32_0 = arith.constant 0 : i32
    %c0_i32_1 = arith.constant 0 : i32
    return %c0_i32, %c0_i32_0 : i32, i32
  }
  func.func @transform_7(%arg0: i32) -> (i32, i32) {
    %c0_i32 = arith.constant 0 : i32
    %c0_i32_0 = arith.constant 0 : i32
    %c0_i32_1 = arith.constant 0 : i32
    return %c0_i32, %c0_i32_0 : i32, i32
  }
  func.func @transform_8(%arg0: i32) -> (i32, i32) {
    %c0_i32 = arith.constant 0 : i32
    %c0_i32_0 = arith.constant 0 : i32
    %c0_i32_1 = arith.constant 0 : i32
    return %c0_i32, %c0_i32_0 : i32, i32
  }
  func.func @transform_9(%arg0: i32) -> (i32, i32) {
    %c0_i32 = arith.constant 0 : i32
    %c0_i32_0 = arith.constant 0 : i32
    %c0_i32_1 = arith.constant 0 : i32
    return %c0_i32, %c0_i32_0 : i32, i32
  }
  func.func @transform_10(%arg0: i32) -> (i32, i32) {
    %c0_i32 = arith.constant 0 : i32
    %c0_i32_0 = arith.constant 0 : i32
    %c0_i32_1 = arith.constant 0 : i32
    return %c0_i32, %c0_i32_0 : i32, i32
  }
  func.func @transform_11(%arg0: i32) -> (i32, i32) {
    %c0_i32 = arith.constant 0 : i32
    %c0_i32_0 = arith.constant 0 : i32
    %c0_i32_1 = arith.constant 0 : i32
    return %c0_i32, %c0_i32_0 : i32, i32
  }
  func.func @transform_12(%arg0: i32) -> (i32, i32, i32) {
    %c0_i32 = arith.constant 0 : i32
    %c0_i32_0 = arith.constant 0 : i32
    %c0_i32_1 = arith.constant 0 : i32
    return %arg0, %c0_i32, %c0_i32_0 : i32, i32, i32
  }
}

</mosaic_0001>

<llo_original>
// kernel: vit_block.1
$region0: #{vit_block.1}
  #allocation0 [shape = 'u32[]', space=smem, size = 0x4, offset = 0x4, fixed_abs, tag = 'smem constant byte address 0x4 - core index']
  #allocation1 [shape = 'u32[72,128]{1,0:T(1,128)}', space=vmem, size = 0x9000, scoped, tag = 'internal scratch']
  %s0 = inlined_call_operand.vmem [shape: f32[2,8,32], index: 0, kind: input, shape index: {}]
  %s1 = inlined_call_operand.vmem [shape: f32[1,32], index: 1, kind: input, shape index: {}]
  %s2 = inlined_call_operand.vmem [shape: f32[1,32], index: 2, kind: input, shape index: {}]
  %s3 = inlined_call_operand.vmem [shape: bf16[32,96], index: 3, kind: input, shape index: {}]
  %s4 = inlined_call_operand.vmem [shape: bf16[32,32], index: 4, kind: input, shape index: {}]
  %s5 = inlined_call_operand.vmem [shape: f32[1,32], index: 5, kind: input, shape index: {}]
  %s6 = inlined_call_operand.vmem [shape: f32[1,32], index: 6, kind: input, shape index: {}]
  %s7 = inlined_call_operand.vmem [shape: f32[1,32], index: 7, kind: input, shape index: {}]
  %s8 = inlined_call_operand.vmem [shape: bf16[32,64], index: 8, kind: input, shape index: {}]
  %s9 = inlined_call_operand.vmem [shape: f32[1,64], index: 9, kind: input, shape index: {}]
  %s10 = inlined_call_operand.vmem [shape: bf16[64,32], index: 10, kind: input, shape index: {}]
  %s11 = inlined_call_operand.vmem [shape: f32[1,32], index: 11, kind: input, shape index: {}]
  %s12 = inlined_call_operand.hbm [shape: f32[2,8,32], index: 12, kind: output, shape index: {}]
  %s13 = sld [smem:[#allocation0]]
  $region81: #{vit_block.1} parent=0
    _
  %s15 = ssub.s32 1, %s13
  %s16 = scalar_select 0, %s15, %s13
  $region1: #{vit_block.1} parent=0
    #allocation2 [shape = 'u8[8192]{0}', space=vmem, size = 0x2000, scoped, tag = 'output window, operand 0']
    #allocation3 [shape = 's32[2]{0}', space=sflag, size = 0x8, scoped, tag = 'scoped memory for vit_block.1']
    %17 = vsyncpa [#allocation3], 0
    %s18 = scalar_lea.sflag [#allocation3], 1
    %19 = vsyncpa %s18, 0
    loop: start=0, step=1, limit=4
    $region2: #{vit_block.1} parent=1 // loop_pre_header
      _
    $region3: #{vit_block.1} parent=1 // loop_header
      %s21 = sphi 0, %s25
      %p22 = scmp.ge.s32.totalorder %s21, 4
      %s31 = sphi 0, %s33
      %s34 = sphi 0, %s31
      %s35 = sphi 0, %s34
      %s51 = sphi 0, %s35
      %s55 = sphi 0, %s55
      %s57 = sphi 0, %s55
      %s58 = sphi 0, %s57
      %s72 = sphi 0, %s58
      %s76 = sphi 0, %s76
      %s78 = sphi 0, %s76
      %s79 = sphi 0, %s78
      %s93 = sphi 0, %s79
      %s97 = sphi 0, %s97
      %s99 = sphi 0, %s97
      %s100 = sphi 0, %s99
      %s114 = sphi 0, %s100
      %s118 = sphi 0, %s118
      %s120 = sphi 0, %s118
      %s121 = sphi 0, %s120
      %s135 = sphi 0, %s121
      %s139 = sphi 0, %s139
      %s141 = sphi 0, %s139
      %s142 = sphi 0, %s141
      %s156 = sphi 0, %s142
      %s160 = sphi 0, %s160
      %s162 = sphi 0, %s160
      %s163 = sphi 0, %s162
      %s177 = sphi 0, %s163
      %s181 = sphi 0, %s181
      %s183 = sphi 0, %s181
      %s184 = sphi 0, %s183
      %s198 = sphi 0, %s184
      %s202 = sphi 0, %s202
      %s204 = sphi 0, %s202
      %s205 = sphi 0, %s204
      %s219 = sphi 0, %s205
      %s223 = sphi 0, %s223
      %s225 = sphi 0, %s223
      %s226 = sphi 0, %s225
      %s240 = sphi 0, %s226
      %s244 = sphi 0, %s244
      %s246 = sphi 0, %s244
      %s247 = sphi 0, %s246
      %s261 = sphi 0, %s247
      %s265 = sphi 0, %s265
      %s267 = sphi 0, %s265
      %s268 = sphi 0, %s267
      %s282 = sphi 0, %s268
      %s288 = sphi 0, %s290
      %s291 = sphi 0, %s288
      %s292 = sphi 0, %s291
      %s308 = sphi 0, %s292
    $region4: #{vit_block.1} parent=1 // loop_header_branch
      %24 = sbr.rel (%p22) target = $region8
    $region5: #{vit_block.1} parent=1 // loop_body
      %s26 = ssub.s32 %s21, 1
      %s27 = ssub.s32 %s21, 2
      %s28 = sadd.s32 %s21, 1
      %s29 = ssub.s32 %s21, %s28
      %p30 = scmp.eq.s32.totalorder %s29, 0
      %s32 = sadd.s32 %s31, 1
      %s33 = scalar_select %p30, %s31, %s32
      %p36 = pneg %p30
      %p37 = scmp.eq.s32.totalorder %s21, 1
      %p38 = por %p36, %p37
      %p39 = scmp.ne.s32.totalorder %s31, %s34
      %p40 = scmp.eq.s32.totalorder %s21, 0
      %p41 = por %p39, %p40
      %p42 = scmp.ne.s32.totalorder %s31, %s34
      %p43 = scmp.eq.s32.totalorder %s26, 1
      %p44 = por %p42, %p43
      %p45 = scmp.ne.s32.totalorder %s34, %s35
      %p46 = scmp.eq.s32.totalorder %s26, 0
      %p47 = por %p45, %p46
      %p48 = scmp.ne.s32.totalorder %s34, %s35
      %p49 = scmp.eq.s32.totalorder %s27, 1
      %p50 = por %p48, %p49
      %p52 = scmp.ne.s32.totalorder %s35, %s51
      %p53 = scmp.eq.s32.totalorder %s27, 0
      %p54 = por %p52, %p53
      %s56 = sadd.s32 %s55, 1
      %p59 = scmp.eq.s32.totalorder %s21, 1
      %p60 = scmp.ne.s32.totalorder %s55, %s57
      %p61 = scmp.eq.s32.totalorder %s21, 0
      %p62 = por %p60, %p61
      %p63 = scmp.ne.s32.totalorder %s55, %s57
      %p64 = scmp.eq.s32.totalorder %s26, 1
      %p65 = por %p63, %p64
      %p66 = scmp.ne.s32.totalorder %s57, %s58
      %p67 = scmp.eq.s32.totalorder %s26, 0
      %p68 = por %p66, %p67
      %p69 = scmp.ne.s32.totalorder %s57, %s58
      %p70 = scmp.eq.s32.totalorder %s27, 1
      %p71 = por %p69, %p70
      %p73 = scmp.ne.s32.totalorder %s58, %s72
      %p74 = scmp.eq.s32.totalorder %s27, 0
      %p75 = por %p73, %p74
      %s77 = sadd.s32 %s76, 1
      %p80 = scmp.eq.s32.totalorder %s21, 1
      %p81 = scmp.ne.s32.totalorder %s76, %s78
      %p82 = scmp.eq.s32.totalorder %s21, 0
      %p83 = por %p81, %p82
      %p84 = scmp.ne.s32.totalorder %s76, %s78
      %p85 = scmp.eq.s32.totalorder %s26, 1
      %p86 = por %p84, %p85
      %p87 = scmp.ne.s32.totalorder %s78, %s79
      %p88 = scmp.eq.s32.totalorder %s26, 0
      %p89 = por %p87, %p88
      %p90 = scmp.ne.s32.totalorder %s78, %s79
      %p91 = scmp.eq.s32.totalorder %s27, 1
      %p92 = por %p90, %p91
      %p94 = scmp.ne.s32.totalorder %s79, %s93
      %p95 = scmp.eq.s32.totalorder %s27, 0
      %p96 = por %p94, %p95
      %s98 = sadd.s32 %s97, 1
      %p101 = scmp.eq.s32.totalorder %s21, 1
      %p102 = scmp.ne.s32.totalorder %s97, %s99
      %p103 = scmp.eq.s32.totalorder %s21, 0
      %p104 = por %p102, %p103
      %p105 = scmp.ne.s32.totalorder %s97, %s99
      %p106 = scmp.eq.s32.totalorder %s26, 1
      %p107 = por %p105, %p106
      %p108 = scmp.ne.s32.totalorder %s99, %s100
      %p109 = scmp.eq.s32.totalorder %s26, 0
      %p110 = por %p108, %p109
      %p111 = scmp.ne.s32.totalorder %s99, %s100
      %p112 = scmp.eq.s32.totalorder %s27, 1
      %p113 = por %p111, %p112
      %p115 = scmp.ne.s32.totalorder %s100, %s114
      %p116 = scmp.eq.s32.totalorder %s27, 0
      %p117 = por %p115, %p116
      %s119 = sadd.s32 %s118, 1
      %p122 = scmp.eq.s32.totalorder %s21, 1
      %p123 = scmp.ne.s32.totalorder %s118, %s120
      %p124 = scmp.eq.s32.totalorder %s21, 0
      %p125 = por %p123, %p124
      %p126 = scmp.ne.s32.totalorder %s118, %s120
      %p127 = scmp.eq.s32.totalorder %s26, 1
      %p128 = por %p126, %p127
      %p129 = scmp.ne.s32.totalorder %s120, %s121
      %p130 = scmp.eq.s32.totalorder %s26, 0
      %p131 = por %p129, %p130
      %p132 = scmp.ne.s32.totalorder %s120, %s121
      %p133 = scmp.eq.s32.totalorder %s27, 1
      %p134 = por %p132, %p133
      %p136 = scmp.ne.s32.totalorder %s121, %s135
      %p137 = scmp.eq.s32.totalorder %s27, 0
      %p138 = por %p136, %p137
      %s140 = sadd.s32 %s139, 1
      %p143 = scmp.eq.s32.totalorder %s21, 1
      %p144 = scmp.ne.s32.totalorder %s139, %s141
      %p145 = scmp.eq.s32.totalorder %s21, 0
      %p146 = por %p144, %p145
      %p147 = scmp.ne.s32.totalorder %s139, %s141
      %p148 = scmp.eq.s32.totalorder %s26, 1
      %p149 = por %p147, %p148
      %p150 = scmp.ne.s32.totalorder %s141, %s142
      %p151 = scmp.eq.s32.totalorder %s26, 0
      %p152 = por %p150, %p151
      %p153 = scmp.ne.s32.totalorder %s141, %s142
      %p154 = scmp.eq.s32.totalorder %s27, 1
      %p155 = por %p153, %p154
      %p157 = scmp.ne.s32.totalorder %s142, %s156
      %p158 = scmp.eq.s32.totalorder %s27, 0
      %p159 = por %p157, %p158
      %s161 = sadd.s32 %s160, 1
      %p164 = scmp.eq.s32.totalorder %s21, 1
      %p165 = scmp.ne.s32.totalorder %s160, %s162
      %p166 = scmp.eq.s32.totalorder %s21, 0
      %p167 = por %p165, %p166
      %p168 = scmp.ne.s32.totalorder %s160, %s162
      %p169 = scmp.eq.s32.totalorder %s26, 1
      %p170 = por %p168, %p169
      %p171 = scmp.ne.s32.totalorder %s162, %s163
      %p172 = scmp.eq.s32.totalorder %s26, 0
      %p173 = por %p171, %p172
      %p174 = scmp.ne.s32.totalorder %s162, %s163
      %p175 = scmp.eq.s32.totalorder %s27, 1
      %p176 = por %p174, %p175
      %p178 = scmp.ne.s32.totalorder %s163, %s177
      %p179 = scmp.eq.s32.totalorder %s27, 0
      %p180 = por %p178, %p179
      %s182 = sadd.s32 %s181, 1
      %p185 = scmp.eq.s32.totalorder %s21, 1
      %p186 = scmp.ne.s32.totalorder %s181, %s183
      %p187 = scmp.eq.s32.totalorder %s21, 0
      %p188 = por %p186, %p187
      %p189 = scmp.ne.s32.totalorder %s181, %s183
      %p190 = scmp.eq.s32.totalorder %s26, 1
      %p191 = por %p189, %p190
      %p192 = scmp.ne.s32.totalorder %s183, %s184
      %p193 = scmp.eq.s32.totalorder %s26, 0
      %p194 = por %p192, %p193
      %p195 = scmp.ne.s32.totalorder %s183, %s184
      %p196 = scmp.eq.s32.totalorder %s27, 1
      %p197 = por %p195, %p196
      %p199 = scmp.ne.s32.totalorder %s184, %s198
      %p200 = scmp.eq.s32.totalorder %s27, 0
      %p201 = por %p199, %p200
      %s203 = sadd.s32 %s202, 1
      %p206 = scmp.eq.s32.totalorder %s21, 1
      %p207 = scmp.ne.s32.totalorder %s202, %s204
      %p208 = scmp.eq.s32.totalorder %s21, 0
      %p209 = por %p207, %p208
      %p210 = scmp.ne.s32.totalorder %s202, %s204
      %p211 = scmp.eq.s32.totalorder %s26, 1
      %p212 = por %p210, %p211
      %p213 = scmp.ne.s32.totalorder %s204, %s205
      %p214 = scmp.eq.s32.totalorder %s26, 0
      %p215 = por %p213, %p214
      %p216 = scmp.ne.s32.totalorder %s204, %s205
      %p217 = scmp.eq.s32.totalorder %s27, 1
      %p218 = por %p216, %p217
      %p220 = scmp.ne.s32.totalorder %s205, %s219
      %p221 = scmp.eq.s32.totalorder %s27, 0
      %p222 = por %p220, %p221
      %s224 = sadd.s32 %s223, 1
      %p227 = scmp.eq.s32.totalorder %s21, 1
      %p228 = scmp.ne.s32.totalorder %s223, %s225
      %p229 = scmp.eq.s32.totalorder %s21, 0
      %p230 = por %p228, %p229
      %p231 = scmp.ne.s32.totalorder %s223, %s225
      %p232 = scmp.eq.s32.totalorder %s26, 1
      %p233 = por %p231, %p232
      %p234 = scmp.ne.s32.totalorder %s225, %s226
      %p235 = scmp.eq.s32.totalorder %s26, 0
      %p236 = por %p234, %p235
      %p237 = scmp.ne.s32.totalorder %s225, %s226
      %p238 = scmp.eq.s32.totalorder %s27, 1
      %p239 = por %p237, %p238
      %p241 = scmp.ne.s32.totalorder %s226, %s240
      %p242 = scmp.eq.s32.totalorder %s27, 0
      %p243 = por %p241, %p242
      %s245 = sadd.s32 %s244, 1
      %p248 = scmp.eq.s32.totalorder %s21, 1
      %p249 = scmp.ne.s32.totalorder %s244, %s246
      %p250 = scmp.eq.s32.totalorder %s21, 0
      %p251 = por %p249, %p250
      %p252 = scmp.ne.s32.totalorder %s244, %s246
      %p253 = scmp.eq.s32.totalorder %s26, 1
      %p254 = por %p252, %p253
      %p255 = scmp.ne.s32.totalorder %s246, %s247
      %p256 = scmp.eq.s32.totalorder %s26, 0
      %p257 = por %p255, %p256
      %p258 = scmp.ne.s32.totalorder %s246, %s247
      %p259 = scmp.eq.s32.totalorder %s27, 1
      %p260 = por %p258, %p259
      %p262 = scmp.ne.s32.totalorder %s247, %s261
      %p263 = scmp.eq.s32.totalorder %s27, 0
      %p264 = por %p262, %p263
      %s266 = sadd.s32 %s265, 1
      %p269 = scmp.eq.s32.totalorder %s21, 1
      %p270 = scmp.ne.s32.totalorder %s265, %s267
      %p271 = scmp.eq.s32.totalorder %s21, 0
      %p272 = por %p270, %p271
      %p273 = scmp.ne.s32.totalorder %s265, %s267
      %p274 = scmp.eq.s32.totalorder %s26, 1
      %p275 = por %p273, %p274
      %p276 = scmp.ne.s32.totalorder %s267, %s268
      %p277 = scmp.eq.s32.totalorder %s26, 0
      %p278 = por %p276, %p277
      %p279 = scmp.ne.s32.totalorder %s267, %s268
      %p280 = scmp.eq.s32.totalorder %s27, 1
      %p281 = por %p279, %p280
      %p283 = scmp.ne.s32.totalorder %s268, %s282
      %p284 = scmp.eq.s32.totalorder %s27, 0
      %p285 = por %p283, %p284
      %s286 = ssub.s32 %s21, %s28
      %p287 = scmp.eq.s32.totalorder %s286, 0
      %s289 = sadd.s32 %s288, 1
      %s290 = scalar_select %p287, %s288, %s289
      %p293 = pneg %p287
      %p294 = scmp.eq.s32.totalorder %s21, 1
      %p295 = por %p293, %p294
      %p296 = scmp.ne.s32.totalorder %s288, %s291
      %p297 = scmp.eq.s32.totalorder %s21, 0
      %p298 = por %p296, %p297
      %p299 = scmp.ne.s32.totalorder %s288, %s291
      %p300 = scmp.eq.s32.totalorder %s26, 1
      %p301 = por %p299, %p300
      %p302 = scmp.ne.s32.totalorder %s291, %s292
      %p303 = scmp.eq.s32.totalorder %s26, 0
      %p304 = por %p302, %p303
      %p305 = scmp.ne.s32.totalorder %s291, %s292
      %p306 = scmp.eq.s32.totalorder %s27, 1
      %p307 = por %p305, %p306
      %p309 = scmp.ne.s32.totalorder %s292, %s308
      %p310 = scmp.eq.s32.totalorder %s27, 0
      %p311 = por %p309, %p310
      %p312 = scmp.le.s32.totalorder 1, %s21
      %p313 = scmp.lt.s32.totalorder %s21, 3
      %p314 = pnand %p312, %p313
      %p315 = pneg %p314
      // Predicated region
      $region9: #{vit_block.1} parent=5 // pred_check
        _
      $region10: #{vit_block.1} parent=5 // pred_check_branch
        %317 = sbr.rel (%p314) target = $region12
      $region11: #{vit_block.1} parent=5 // pred_region
        %s318 = ssub.s32 %s21, 1
        // Predicated region
        $region13: #{vit_block.1} parent=11 // pred_check
          %p319 = pneg %p68
        $region14: #{vit_block.1} parent=11 // pred_check_branch
          %321 = sbr.rel (%p319) target = $region16
        $region15: #{vit_block.1} parent=11 // pred_region
          _
        $region16: #{vit_block.1} parent=11 // pred_fallthru
          _
        // Predicated region
        $region17: #{vit_block.1} parent=11 // pred_check
          %p322 = pneg %p89
        $region18: #{vit_block.1} parent=11 // pred_check_branch
          %324 = sbr.rel (%p322) target = $region20
        $region19: #{vit_block.1} parent=11 // pred_region
          _
        $region20: #{vit_block.1} parent=11 // pred_fallthru
          _
        // Predicated region
        $region21: #{vit_block.1} parent=11 // pred_check
          %p325 = pneg %p110
        $region22: #{vit_block.1} parent=11 // pred_check_branch
          %327 = sbr.rel (%p325) target = $region24
        $region23: #{vit_block.1} parent=11 // pred_region
          _
        $region24: #{vit_block.1} parent=11 // pred_fallthru
          _
        // Predicated region
        $region25: #{vit_block.1} parent=11 // pred_check
          %p328 = pneg %p131
        $region26: #{vit_block.1} parent=11 // pred_check_branch
          %330 = sbr.rel (%p328) target = $region28
        $region27: #{vit_block.1} parent=11 // pred_region
          _
        $region28: #{vit_block.1} parent=11 // pred_fallthru
          _
        // Predicated region
        $region29: #{vit_block.1} parent=11 // pred_check
          %p331 = pneg %p152
        $region30: #{vit_block.1} parent=11 // pred_check_branch
          %333 = sbr.rel (%p331) target = $region32
        $region31: #{vit_block.1} parent=11 // pred_region
          _
        $region32: #{vit_block.1} parent=11 // pred_fallthru
          _
        // Predicated region
        $region33: #{vit_block.1} parent=11 // pred_check
          %p334 = pneg %p173
        $region34: #{vit_block.1} parent=11 // pred_check_branch
          %336 = sbr.rel (%p334) target = $region36
        $region35: #{vit_block.1} parent=11 // pred_region
          _
        $region36: #{vit_block.1} parent=11 // pred_fallthru
          _
        // Predicated region
        $region37: #{vit_block.1} parent=11 // pred_check
          %p337 = pneg %p194
        $region38: #{vit_block.1} parent=11 // pred_check_branch
          %339 = sbr.rel (%p337) target = $region40
        $region39: #{vit_block.1} parent=11 // pred_region
          _
        $region40: #{vit_block.1} parent=11 // pred_fallthru
          _
        // Predicated region
        $region41: #{vit_block.1} parent=11 // pred_check
          %p340 = pneg %p215
        $region42: #{vit_block.1} parent=11 // pred_check_branch
          %342 = sbr.rel (%p340) target = $region44
        $region43: #{vit_block.1} parent=11 // pred_region
          _
        $region44: #{vit_block.1} parent=11 // pred_fallthru
          _
        // Predicated region
        $region45: #{vit_block.1} parent=11 // pred_check
          %p343 = pneg %p236
        $region46: #{vit_block.1} parent=11 // pred_check_branch
          %345 = sbr.rel (%p343) target = $region48
        $region47: #{vit_block.1} parent=11 // pred_region
          _
        $region48: #{vit_block.1} parent=11 // pred_fallthru
          _
        // Predicated region
        $region49: #{vit_block.1} parent=11 // pred_check
          %p346 = pneg %p257
        $region50: #{vit_block.1} parent=11 // pred_check_branch
          %348 = sbr.rel (%p346) target = $region52
        $region51: #{vit_block.1} parent=11 // pred_region
          _
        $region52: #{vit_block.1} parent=11 // pred_fallthru
          _
        // Predicated region
        $region53: #{vit_block.1} parent=11 // pred_check
          %p349 = pneg %p278
        $region54: #{vit_block.1} parent=11 // pred_check_branch
          %351 = sbr.rel (%p349) target = $region56
        $region55: #{vit_block.1} parent=11 // pred_region
          _
        $region56: #{vit_block.1} parent=11 // pred_fallthru
          _
      $region12: #{vit_block.1} parent=5 // pred_fallthru
        _
      %p352 = scmp.lt.s32.totalorder %s21, 2
      // Predicated region
      $region57: #{vit_block.1} parent=5 // pred_check
        %p353 = pneg %p352
      $region58: #{vit_block.1} parent=5 // pred_check_branch
        %355 = sbr.rel (%p353) target = $region60
      $region59: #{vit_block.1} parent=5 // pred_region
        // Predicated region
        $region61: #{vit_block.1} parent=59 // pred_check
          %p356 = pneg %p41
        $region62: #{vit_block.1} parent=59 // pred_check_branch
          %358 = sbr.rel (%p356) target = $region64
        $region63: #{vit_block.1} parent=59 // pred_region
          %p359 = scmp.lt.s32.totalorder %s21, 1
          %s360 = scalar_select %p359, %s21, 1
          %s361 = smul.addr %s360, 8
          %s362 = scalar_lea.vmem %s0, %s361
        $region64: #{vit_block.1} parent=59 // pred_fallthru
          _
      $region60: #{vit_block.1} parent=5 // pred_fallthru
        _
      %p363 = scmp.le.s32.totalorder 1, %s21
      %p364 = scmp.lt.s32.totalorder %s21, 3
      %p365 = pnand %p363, %p364
      %p366 = pneg %p365
      // Predicated region
      $region65: #{vit_block.1} parent=5 // pred_check
        _
      $region66: #{vit_block.1} parent=5 // pred_check_branch
        %368 = sbr.rel (%p365) target = $region68
      $region67: #{vit_block.1} parent=5 // pred_region
        %s369 = ssub.s32 %s21, 1
        %p370 = scmp.lt.s32.totalorder %s26, 1
        %s371 = scalar_select %p370, %s26, 1
        %s372 = smul.addr %s371, 8
        %s373 = scalar_lea.vmem %s0, %s372
        %p374 = pneg %p47
        %p375 = pneg %p44
        %p376 = pneg %p68
        %p377 = pneg %p65
        %p378 = pneg %p89
        %p379 = pneg %p86
        %p380 = pneg %p110
        %p381 = pneg %p107
        %p382 = pneg %p131
        %p383 = pneg %p128
        %p384 = pneg %p152
        %p385 = pneg %p149
        %p386 = pneg %p173
        %p387 = pneg %p170
        %p388 = pneg %p194
        %p389 = pneg %p191
        %p390 = pneg %p215
        %p391 = pneg %p212
        %p392 = pneg %p236
        %p393 = pneg %p233
        %p394 = pneg %p257
        %p395 = pneg %p254
        %p396 = pneg %p278
        %p397 = pneg %p275
        %p398 = pneg %p304
        %p399 = pneg %p301
        %s400 = sand.u32 %s291, 1
        %s401 = scalar_lea.sflag [#allocation3], %s400
        %s402 = sand.u32 %s291, 1
        %s403 = smul.addr %s402, 8
        %s404 = scalar_lea.vmem [#allocation2], %s403
        %p405 = scmp.lt.s32.totalorder %s26, 1
        %s406 = scalar_select %p405, %s26, 1
        %s407 = smul.addr %s406, 8
        %s408 = scalar_lea.vmem %s0, %s407
        %v410 = vld [vmem:[%s408] sm:$0xff]
        %v411 = vld [vmem:[%s1] sm:$0x1]
        %v412 = vld [vmem:[%s2] sm:$0x1]
        %vm413 = vcmask 261120
        %v414 = vsel %vm413, %v410, 0.0
        %415 = vadd.xlane.f32.xlu0 %v414
        %v416 = vpop.xlane.xlu0 %415
        %v417 = vmul.f32 %v416, 0.03125
        %v418 = vmul.f32 %v410, %v410
        %v419 = vsel %vm413, %v418, 0.0
        %420 = vadd.xlane.f32.xlu0 %v419
        %v421 = vpop.xlane.xlu0 %420
        %v422 = vmul.f32 %v421, 0.03125
        %v423 = vmul.f32 %v417, %v417
        %v424 = vsub.f32 %v422, %v423
        %v425 = vsub.f32 %v410, %v417
        %v426 = vadd.f32 %v424, 1e-05
        %v427 = vrsqrt.pop %v426
        %v428 = vmul.f32 %v427, %v426
        %v429 = vmul.f32 %v428, %v427
        %v430 = vmul.f32 0.5, %v429
        %v431 = vsub.f32 1.5, %v430
        %v432 = vmul.f32 %v427, %v431
        %vm433 = vweird.f32 %v426
        %vm434 = vweird.f32 %v427
        %vm435 = vmor %vm433, %vm434
        %v436 = vsel %vm435, %v427, %v432
        %v437 = vmul.f32 %v425, %v436
        %v439 = vperm.slane %v411, 0
        %v441 = vmul.f32 %v437, %v439
        %v443 = vperm.slane %v412, 0
        %v445 = vadd.f32 %v441, %v443
        %v446 = vpack.c.bf16 %v445, %v445
        %v447 = vld [vmem:[%s3] sm:$0xf]
        %v448 = vld [vmem:[%s3 + $0x4] sm:$0xf]
        %v449 = vld [vmem:[%s3 + $0x8] sm:$0xf]
        %v450 = vld [vmem:[%s3 + $0xc] sm:$0xf]
        %v455 = vunpack.c.l.b16 %v447
        %v456 = vunpack.c.l.b16 %v448
        %v457 = vunpack.c.l.b16 %v449
        %v458 = vunpack.c.l.b16 %v450
        %v459 = vpack.c.b16 %v456, %v455
        %v460 = vpack.c.b16 %v458, %v457
        %v464 = vsel %vm413, %v446, 0
        %466 = vmatpush.bf16.msra.mxu0 0
        %467 = vmatpush.bf16.msra.mxu0 0
        %468 = vmatpush.bf16.msra.mxu0 0
        %469 = vmatpush.bf16.msra.mxu0 0
        %470 = vmatpush.bf16.msra.mxu0 0
        %471 = vmatpush.bf16.msra.mxu0 0
        %472 = vmatpush.bf16.msra.mxu0 %v460
        %473 = vmatpush.bf16.msra.mxu0 %v459
        %474 = vmatmul.bf16.gmra.mxu0 %v464
        %v475 = vpop.f32.mrf.mxu0
        %v476 = vadd.f32 0.0, %v475
        %v477 = vpop.f32.mrf.mxu0
        %478 = vdwg.mxu0
        %v479 = vpack.c.bf16 %v476, %v476
        %481 = vrot.lane.b32.xlu0 %v479, 120
        %v482 = vpop.permute.xlu0 %481
        %483 = vrot.lane.b32.xlu0 %v479, 112
        %v484 = vpop.permute.xlu0 %483
        %485 = vrot.lane.b32.xlu0 %v479, 104
        %v486 = vpop.permute.xlu0 %485
        %v487 = vunpack.c.l.b16 %v479
        %v488 = vpack.c.b16 %v487, %v487
        %489 = vrot.lane.b32.xlu0 %v488, 96
        %v490 = vpop.permute.xlu0 %489
        %vm491 = vcmask 64512
        %v493 = vsel %vm491, %v479, 0
        %v496 = vsel %vm491, %v490, 0
        %498 = vmatpush.bf16.xpose.msra.mxu0 0
        %499 = vmatpush.bf16.xpose.msra.mxu0 0
        %500 = vmatpush.bf16.xpose.msra.mxu0 0
        %501 = vmatpush.bf16.xpose.msra.mxu0 0
        %502 = vmatpush.bf16.xpose.msra.mxu0 0
        %503 = vmatpush.bf16.xpose.msra.mxu0 0
        %504 = vmatpush.bf16.xpose.msra.mxu0 0
        %505 = vmatpush.bf16.xpose.msra.mxu0 %v496
        %506 = vmatmul.bf16.gmra.mxu0 %v493
        %v507 = vpop.f32.mrf.mxu0
        %v508 = vadd.f32 0.0, %v507
        %v509 = vpop.f32.mrf.mxu0
        %510 = vdwg.mxu0
        %v511 = vunpack.c.l.b16 %v482
        %v512 = vpack.c.b16 %v511, %v511
        %513 = vrot.lane.b32.xlu0 %v512, 96
        %v514 = vpop.permute.xlu0 %513
        %v516 = vsel %vm491, %v482, 0
        %v519 = vsel %vm491, %v514, 0
        %521 = vmatpush.bf16.xpose.msra.mxu0 0
        %522 = vmatpush.bf16.xpose.msra.mxu0 0
        %523 = vmatpush.bf16.xpose.msra.mxu0 0
        %524 = vmatpush.bf16.xpose.msra.mxu0 0
        %525 = vmatpush.bf16.xpose.msra.mxu0 0
        %526 = vmatpush.bf16.xpose.msra.mxu0 0
        %527 = vmatpush.bf16.xpose.msra.mxu0 0
        %528 = vmatpush.bf16.xpose.msra.mxu0 %v519
        %529 = vmatmul.bf16.gmra.mxu0 %v516
        %v530 = vpop.f32.mrf.mxu0
        %v531 = vadd.f32 0.0, %v530
        %v532 = vpop.f32.mrf.mxu0
        %533 = vdwg.mxu0
        %v534 = vunpack.c.l.b16 %v484
        %v535 = vpack.c.b16 %v534, %v534
        %536 = vrot.lane.b32.xlu0 %v535, 96
        %v537 = vpop.permute.xlu0 %536
        %v539 = vsel %vm491, %v484, 0
        %v542 = vsel %vm491, %v537, 0
        %544 = vmatpush.bf16.xpose.msra.mxu0 0
        %545 = vmatpush.bf16.xpose.msra.mxu0 0
        %546 = vmatpush.bf16.xpose.msra.mxu0 0
        %547 = vmatpush.bf16.xpose.msra.mxu0 0
        %548 = vmatpush.bf16.xpose.msra.mxu0 0
        %549 = vmatpush.bf16.xpose.msra.mxu0 0
        %550 = vmatpush.bf16.xpose.msra.mxu0 0
        %551 = vmatpush.bf16.xpose.msra.mxu0 %v542
        %552 = vmatmul.bf16.gmra.mxu0 %v539
        %v553 = vpop.f32.mrf.mxu0
        %v554 = vadd.f32 0.0, %v553
        %v555 = vpop.f32.mrf.mxu0
        %556 = vdwg.mxu0
        %v557 = vunpack.c.l.b16 %v486
        %v558 = vpack.c.b16 %v557, %v557
        %559 = vrot.lane.b32.xlu0 %v558, 96
        %v560 = vpop.permute.xlu0 %559
        %v562 = vsel %vm491, %v486, 0
        %v565 = vsel %vm491, %v560, 0
        %567 = vmatpush.bf16.xpose.msra.mxu0 0
        %568 = vmatpush.bf16.xpose.msra.mxu0 0
        %569 = vmatpush.bf16.xpose.msra.mxu0 0
        %570 = vmatpush.bf16.xpose.msra.mxu0 0
        %571 = vmatpush.bf16.xpose.msra.mxu0 0
        %572 = vmatpush.bf16.xpose.msra.mxu0 0
        %573 = vmatpush.bf16.xpose.msra.mxu0 0
        %574 = vmatpush.bf16.xpose.msra.mxu0 %v565
        %575 = vmatmul.bf16.gmra.mxu0 %v562
        %v576 = vpop.f32.mrf.mxu0
        %v577 = vadd.f32 0.0, %v576
        %v578 = vpop.f32.mrf.mxu0
        %579 = vdwg.mxu0
        %v580 = vsel %vm491, %v508, -inf
        %581 = vmax.xlane.f32.xlu0 %v580
        %v582 = vpop.xlane.xlu0 %581
        %v583 = vsel %vm491, %v531, -inf
        %584 = vmax.xlane.f32.xlu0 %v583
        %v585 = vpop.xlane.xlu0 %584
        %v586 = vsel %vm491, %v554, -inf
        %587 = vmax.xlane.f32.xlu0 %v586
        %v588 = vpop.xlane.xlu0 %587
        %v589 = vsel %vm491, %v577, -inf
        %590 = vmax.xlane.f32.xlu0 %v589
        %v591 = vpop.xlane.xlu0 %590
        %v592 = vsub.f32 %v508, %v582
        %v593 = vsub.f32 %v531, %v585
        %v594 = vsub.f32 %v554, %v588
        %v595 = vsub.f32 %v577, %v591
        %v596 = vmul.f32 %v592, 1.442695
        %v597 = vpow.pop %v596
        %v598 = vmul.f32 %v593, 1.442695
        %v599 = vpow.pop %v598
        %v600 = vmul.f32 %v594, 1.442695
        %v601 = vpow.pop %v600
        %v602 = vmul.f32 %v595, 1.442695
        %v603 = vpow.pop %v602
        %v604 = vsel %vm491, %v597, 0.0
        %605 = vadd.xlane.f32.xlu0 %v604
        %v606 = vpop.xlane.xlu0 %605
        %v607 = vsel %vm491, %v599, 0.0
        %608 = vadd.xlane.f32.xlu0 %v607
        %v609 = vpop.xlane.xlu0 %608
        %v610 = vsel %vm491, %v601, 0.0
        %611 = vadd.xlane.f32.xlu0 %v610
        %v612 = vpop.xlane.xlu0 %611
        %v613 = vsel %vm491, %v603, 0.0
        %614 = vadd.xlane.f32.xlu0 %v613
        %v615 = vpop.xlane.xlu0 %614
        %v616 = vrcp.pop %v606
        %v617 = vmul.f32 %v606, %v616
        %v618 = vsub.f32 1.0, %v617
        %v619 = vmul.f32 %v616, %v618
        %v620 = vadd.f32 %v616, %v619
        %vm621 = vweird.f32 %v606
        %vm622 = vweird.f32 %v616
        %vm623 = vmor %vm621, %vm622
        %v624 = vsel %vm623, %v616, %v620
        %v625 = vand.u32 2147483647, %v606
        %vm626 = vcmp.eq.f32.partialorder %v625, 8.507059e+37
        %v627 = vand.u32 %v606, 2147483648
        %v628 = vor.u32 1.1754944e-38, %v627
        %v629 = vsel %vm626, %v628, %v624
        %v630 = vmul.f32 %v597, %v629
        %v631 = vrcp.pop %v609
        %v632 = vmul.f32 %v609, %v631
        %v633 = vsub.f32 1.0, %v632
        %v634 = vmul.f32 %v631, %v633
        %v635 = vadd.f32 %v631, %v634
        %vm636 = vweird.f32 %v609
        %vm637 = vweird.f32 %v631
        %vm638 = vmor %vm636, %vm637
        %v639 = vsel %vm638, %v631, %v635
        %v640 = vand.u32 2147483647, %v609
        %vm641 = vcmp.eq.f32.partialorder %v640, 8.507059e+37
        %v642 = vand.u32 %v609, 2147483648
        %v643 = vor.u32 1.1754944e-38, %v642
        %v644 = vsel %vm641, %v643, %v639
        %v645 = vmul.f32 %v599, %v644
        %v646 = vrcp.pop %v612
        %v647 = vmul.f32 %v612, %v646
        %v648 = vsub.f32 1.0, %v647
        %v649 = vmul.f32 %v646, %v648
        %v650 = vadd.f32 %v646, %v649
        %vm651 = vweird.f32 %v612
        %vm652 = vweird.f32 %v646
        %vm653 = vmor %vm651, %vm652
        %v654 = vsel %vm653, %v646, %v650
        %v655 = vand.u32 2147483647, %v612
        %vm656 = vcmp.eq.f32.partialorder %v655, 8.507059e+37
        %v657 = vand.u32 %v612, 2147483648
        %v658 = vor.u32 1.1754944e-38, %v657
        %v659 = vsel %vm656, %v658, %v654
        %v660 = vmul.f32 %v601, %v659
        %v661 = vrcp.pop %v615
        %v662 = vmul.f32 %v615, %v661
        %v663 = vsub.f32 1.0, %v662
        %v664 = vmul.f32 %v661, %v663
        %v665 = vadd.f32 %v661, %v664
        %vm666 = vweird.f32 %v615
        %vm667 = vweird.f32 %v661
        %vm668 = vmor %vm666, %vm667
        %v669 = vsel %vm668, %v661, %v665
        %v670 = vand.u32 2147483647, %v615
        %vm671 = vcmp.eq.f32.partialorder %v670, 8.507059e+37
        %v672 = vand.u32 %v615, 2147483648
        %v673 = vor.u32 1.1754944e-38, %v672
        %v674 = vsel %vm671, %v673, %v669
        %v675 = vmul.f32 %v603, %v674
        %v676 = vpack.c.bf16 %v630, %v630
        %v677 = vpack.c.bf16 %v645, %v645
        %v678 = vpack.c.bf16 %v660, %v660
        %v679 = vpack.c.bf16 %v675, %v675
        %680 = vrot.lane.b32.xlu0 %v488, 64
        %v681 = vpop.permute.xlu0 %680
        %v683 = vsel %vm491, %v676, 0
        %vm685 = vcmask 1043456
        %v687 = vsel %vm685, %v681, 0
        %689 = vmatpush.bf16.msra.mxu0 0
        %690 = vmatpush.bf16.msra.mxu0 0
        %691 = vmatpush.bf16.msra.mxu0 0
        %692 = vmatpush.bf16.msra.mxu0 0
        %693 = vmatpush.bf16.msra.mxu0 0
        %694 = vmatpush.bf16.msra.mxu0 0
        %695 = vmatpush.bf16.msra.mxu0 0
        %696 = vmatpush.bf16.msra.mxu0 %v687
        %697 = vmatmul.bf16.gmra.mxu0 %v683
        %v698 = vpop.f32.mrf.mxu0
        %v699 = vadd.f32 0.0, %v698
        %v700 = vpop.f32.mrf.mxu0
        %701 = vdwg.mxu0
        %702 = vrot.lane.b32.xlu0 %v512, 64
        %v703 = vpop.permute.xlu0 %702
        %v705 = vsel %vm491, %v677, 0
        %v708 = vsel %vm685, %v703, 0
        %710 = vmatpush.bf16.msra.mxu0 0
        %711 = vmatpush.bf16.msra.mxu0 0
        %712 = vmatpush.bf16.msra.mxu0 0
        %713 = vmatpush.bf16.msra.mxu0 0
        %714 = vmatpush.bf16.msra.mxu0 0
        %715 = vmatpush.bf16.msra.mxu0 0
        %716 = vmatpush.bf16.msra.mxu0 0
        %717 = vmatpush.bf16.msra.mxu0 %v708
        %718 = vmatmul.bf16.gmra.mxu0 %v705
        %v719 = vpop.f32.mrf.mxu0
        %v720 = vadd.f32 0.0, %v719
        %v721 = vpop.f32.mrf.mxu0
        %722 = vdwg.mxu0
        %723 = vrot.lane.b32.xlu0 %v535, 64
        %v724 = vpop.permute.xlu0 %723
        %v726 = vsel %vm491, %v678, 0
        %v729 = vsel %vm685, %v724, 0
        %731 = vmatpush.bf16.msra.mxu0 0
        %732 = vmatpush.bf16.msra.mxu0 0
        %733 = vmatpush.bf16.msra.mxu0 0
        %734 = vmatpush.bf16.msra.mxu0 0
        %735 = vmatpush.bf16.msra.mxu0 0
        %736 = vmatpush.bf16.msra.mxu0 0
        %737 = vmatpush.bf16.msra.mxu0 0
        %738 = vmatpush.bf16.msra.mxu0 %v729
        %739 = vmatmul.bf16.gmra.mxu0 %v726
        %v740 = vpop.f32.mrf.mxu0
        %v741 = vadd.f32 0.0, %v740
        %v742 = vpop.f32.mrf.mxu0
        %743 = vdwg.mxu0
        %744 = vrot.lane.b32.xlu0 %v558, 64
        %v745 = vpop.permute.xlu0 %744
        %v747 = vsel %vm491, %v679, 0
        %v750 = vsel %vm685, %v745, 0
        %752 = vmatpush.bf16.msra.mxu0 0
        %753 = vmatpush.bf16.msra.mxu0 0
        %754 = vmatpush.bf16.msra.mxu0 0
        %755 = vmatpush.bf16.msra.mxu0 0
        %756 = vmatpush.bf16.msra.mxu0 0
        %757 = vmatpush.bf16.msra.mxu0 0
        %758 = vmatpush.bf16.msra.mxu0 0
        %759 = vmatpush.bf16.msra.mxu0 %v750
        %760 = vmatmul.bf16.gmra.mxu0 %v747
        %v761 = vpop.f32.mrf.mxu0
        %v762 = vadd.f32 0.0, %v761
        %v763 = vpop.f32.mrf.mxu0
        %764 = vdwg.mxu0
        %766 = vrot.lane.b32.xlu0 %v720, 8
        %v767 = vpop.permute.xlu0 %766
        %770 = vrot.lane.b32.xlu0 %v741, 16
        %v771 = vpop.permute.xlu0 %770
        %774 = vrot.lane.b32.xlu0 %v762, 24
        %v775 = vpop.permute.xlu0 %774
        %v777 = vsel %vm491, %v699, %v767
        %vm778 = vcmask 130048
        %v779 = vsel %vm778, %v777, %v771
        %vm780 = vcmask 195584
        %v781 = vsel %vm780, %v779, %v775
        %v782 = vpack.c.bf16 %v781, %v781
        %v783 = vld [vmem:[%s4] sm:$0xf]
        %v784 = vld [vmem:[%s4 + $0x4] sm:$0xf]
        %v785 = vld [vmem:[%s4 + $0x8] sm:$0xf]
        %v786 = vld [vmem:[%s4 + $0xc] sm:$0xf]
        %v787 = vld [vmem:[%s5] sm:$0x1]
        %v789 = vperm.slane %v787, 0
        %v795 = vunpack.c.l.b16 %v783
        %v796 = vunpack.c.l.b16 %v784
        %v797 = vunpack.c.l.b16 %v785
        %v798 = vunpack.c.l.b16 %v786
        %v799 = vpack.c.b16 %v796, %v795
        %v800 = vpack.c.b16 %v798, %v797
        %v804 = vsel %vm413, %v782, 0
        %806 = vmatpush.bf16.msra.mxu0 0
        %807 = vmatpush.bf16.msra.mxu0 0
        %808 = vmatpush.bf16.msra.mxu0 0
        %809 = vmatpush.bf16.msra.mxu0 0
        %810 = vmatpush.bf16.msra.mxu0 0
        %811 = vmatpush.bf16.msra.mxu0 0
        %812 = vmatpush.bf16.msra.mxu0 %v800
        %813 = vmatpush.bf16.msra.mxu0 %v799
        %814 = vmatmul.bf16.gmra.mxu0 %v804
        %v815 = vpop.f32.mrf.mxu0
        %v816 = vadd.f32 %v789, %v815
        %v817 = vpop.f32.mrf.mxu0
        %818 = vdwg.mxu0
        %v819 = vadd.f32 %v410, %v816
        %v820 = vld [vmem:[%s6] sm:$0x1]
        %v821 = vld [vmem:[%s7] sm:$0x1]
        %v822 = vsel %vm413, %v819, 0.0
        %823 = vadd.xlane.f32.xlu0 %v822
        %v824 = vpop.xlane.xlu0 %823
        %v825 = vmul.f32 %v824, 0.03125
        %v826 = vmul.f32 %v819, %v819
        %v827 = vsel %vm413, %v826, 0.0
        %828 = vadd.xlane.f32.xlu0 %v827
        %v829 = vpop.xlane.xlu0 %828
        %v830 = vmul.f32 %v829, 0.03125
        %v831 = vmul.f32 %v825, %v825
        %v832 = vsub.f32 %v830, %v831
        %v833 = vsub.f32 %v819, %v825
        %v834 = vadd.f32 %v832, 1e-05
        %v835 = vrsqrt.pop %v834
        %v836 = vmul.f32 %v835, %v834
        %v837 = vmul.f32 %v836, %v835
        %v838 = vmul.f32 0.5, %v837
        %v839 = vsub.f32 1.5, %v838
        %v840 = vmul.f32 %v835, %v839
        %vm841 = vweird.f32 %v834
        %vm842 = vweird.f32 %v835
        %vm843 = vmor %vm841, %vm842
        %v844 = vsel %vm843, %v835, %v840
        %v845 = vmul.f32 %v833, %v844
        %v847 = vperm.slane %v820, 0
        %v849 = vmul.f32 %v845, %v847
        %v851 = vperm.slane %v821, 0
        %v853 = vadd.f32 %v849, %v851
        %v854 = vpack.c.bf16 %v853, %v853
        %v855 = vld [vmem:[%s8] sm:$0xf]
        %v856 = vld [vmem:[%s8 + $0x4] sm:$0xf]
        %v857 = vld [vmem:[%s8 + $0x8] sm:$0xf]
        %v858 = vld [vmem:[%s8 + $0xc] sm:$0xf]
        %v859 = vld [vmem:[%s9] sm:$0x1]
        %v861 = vperm.slane %v859, 0
        %v867 = vunpack.c.l.b16 %v855
        %v868 = vunpack.c.l.b16 %v856
        %v869 = vunpack.c.l.b16 %v857
        %v870 = vunpack.c.l.b16 %v858
        %v871 = vpack.c.b16 %v868, %v867
        %v872 = vpack.c.b16 %v870, %v869
        %v876 = vsel %vm413, %v854, 0
        %878 = vmatpush.bf16.msra.mxu0 0
        %879 = vmatpush.bf16.msra.mxu0 0
        %880 = vmatpush.bf16.msra.mxu0 0
        %881 = vmatpush.bf16.msra.mxu0 0
        %882 = vmatpush.bf16.msra.mxu0 0
        %883 = vmatpush.bf16.msra.mxu0 0
        %884 = vmatpush.bf16.msra.mxu0 %v872
        %885 = vmatpush.bf16.msra.mxu0 %v871
        %886 = vmatmul.bf16.gmra.mxu0 %v876
        %v887 = vpop.f32.mrf.mxu0
        %v888 = vadd.f32 %v861, %v887
        %v889 = vpop.f32.mrf.mxu0
        %890 = vdwg.mxu0
        %v891 = vmul.f32 %v888, 0.5
        %v892 = vmul.f32 %v888, 0.044715
        %v893 = vmul.f32 %v892, %v888
        %v894 = vmul.f32 %v893, %v888
        %v895 = vadd.f32 %v888, %v894
        %v896 = vmul.f32 %v895, 0.7978846
        %v897 = vtanh.pop %v896
        %v898 = vadd.f32 %v897, 1.0
        %v899 = vmul.f32 %v891, %v898
        %v900 = vpack.c.bf16 %v899, %v899
        %v901 = vld [vmem:[%s10] sm:$0xf]
        %v902 = vld [vmem:[%s10 + $0x4] sm:$0xf]
        %v903 = vld [vmem:[%s10 + $0x8] sm:$0xf]
        %v904 = vld [vmem:[%s10 + $0xc] sm:$0xf]
        %v905 = vld [vmem:[%s10 + $0x10] sm:$0xf]
        %v906 = vld [vmem:[%s10 + $0x14] sm:$0xf]
        %v907 = vld [vmem:[%s10 + $0x18] sm:$0xf]
        %v908 = vld [vmem:[%s10 + $0x1c] sm:$0xf]
        %v917 = vunpack.c.l.b16 %v901
        %v918 = vunpack.c.l.b16 %v902
        %v919 = vunpack.c.l.b16 %v903
        %v920 = vunpack.c.l.b16 %v904
        %v921 = vunpack.c.l.b16 %v905
        %v922 = vunpack.c.l.b16 %v906
        %v923 = vunpack.c.l.b16 %v907
        %v924 = vunpack.c.l.b16 %v908
        %v925 = vpack.c.b16 %v918, %v917
        %v926 = vpack.c.b16 %v920, %v919
        %v927 = vpack.c.b16 %v922, %v921
        %v928 = vpack.c.b16 %v924, %v923
        %vm933 = vcmask 523264
        %v935 = vsel %vm933, %v900, 0
        %937 = vmatpush.bf16.msra.mxu0 0
        %938 = vmatpush.bf16.msra.mxu0 0
        %939 = vmatpush.bf16.msra.mxu0 0
        %940 = vmatpush.bf16.msra.mxu0 0
        %941 = vmatpush.bf16.msra.mxu0 %v928
        %942 = vmatpush.bf16.msra.mxu0 %v927
        %943 = vmatpush.bf16.msra.mxu0 %v926
        %944 = vmatpush.bf16.msra.mxu0 %v925
        %945 = vmatmul.bf16.gmra.mxu0 %v935
        %v946 = vpop.f32.mrf.mxu0
        %v947 = vadd.f32 0.0, %v946
        %v948 = vpop.f32.mrf.mxu0
        %949 = vdwg.mxu0
        %v950 = vadd.f32 %v819, %v947
        %v951 = vld [vmem:[%s11] sm:$0x1]
        %v953 = vperm.slane %v951, 0
        %v955 = vadd.f32 %v950, %v953
        %956 = vst.msk [vmem:[%s404] sm:$0xff] %vm413, %v955
        %s957 = sand.u32 %s291, 1
        %s958 = scalar_lea.sflag [#allocation3], %s957
        %s959 = sand.u32 %s291, 1
        %s960 = smul.addr %s959, 8
        %s961 = scalar_lea.vmem [#allocation2], %s960
        // Predicated region
        $region69: #{vit_block.1} parent=67 // pred_check
          %p962 = pneg %p301
        $region70: #{vit_block.1} parent=67 // pred_check_branch
          %964 = sbr.rel (%p962) target = $region72
        $region71: #{vit_block.1} parent=67 // pred_region
          %966 = vsyncadd %s958, 0
          %s967 = smul.addr %s26, 8
          %s968 = scalar_lea.hbm %s12, %s967
          %s970 = sshll.u32 %s961, 4
          %s971 = int_to_ptr.vmem [resolvable:$true] %s970
          %s972 = sshll.u32 %s968, 4
          %s973 = int_to_ptr.hbm [resolvable:$true] %s972
          %975 = dma.vmem_to_hbm [thread:$0]  %s971, 128, %s973, %s958
        $region72: #{vit_block.1} parent=67 // pred_fallthru
          _
      $region68: #{vit_block.1} parent=5 // pred_fallthru
        _
      %p976 = scmp.le.s32.totalorder 2, %s21
      // Predicated region
      $region73: #{vit_block.1} parent=5 // pred_check
        %p977 = pneg %p976
      $region74: #{vit_block.1} parent=5 // pred_check_branch
        %979 = sbr.rel (%p977) target = $region76
      $region75: #{vit_block.1} parent=5 // pred_region
        %s980 = ssub.s32 %s21, 2
        // Predicated region
        $region77: #{vit_block.1} parent=75 // pred_check
          %p981 = pneg %p307
        $region78: #{vit_block.1} parent=75 // pred_check_branch
          %983 = sbr.rel (%p981) target = $region80
        $region79: #{vit_block.1} parent=75 // pred_region
          %s984 = sand.u32 %s292, 1
          %s985 = scalar_lea.sflag [#allocation3], %s984
          %s986 = sand.u32 %s292, 1
          %s987 = smul.addr %s986, 8
          %s988 = scalar_lea.vmem [#allocation2], %s987
          %990 = dma.done %s985, 128
        $region80: #{vit_block.1} parent=75 // pred_fallthru
          _
      $region76: #{vit_block.1} parent=5 // pred_fallthru
        _
    $region6: #{vit_block.1} parent=1 // loop_footer
      %s25 = sadd.s32 1, %s21
    $region7: #{vit_block.1} parent=1 // loop_footer_branch
      %20 = sbr.rel target = $region3
    $region8: #{vit_block.1} parent=1 // loop_exit
      _
    %991 = vsyncpa [#allocation3], 1
    %s992 = scalar_lea.sflag [#allocation3], 1
    %993 = vsyncpa %s992, 1

</llo_original>
